<compile_context>
chip_gen: v6e
topology: v6e:2x2x1
jax: 0.10.0
libtpu: 0.0.40
codegen_flags: <defaults>
</compile_context>

<pallas_src>
import jax
import jax.numpy as jnp
from jax import lax
from jax.experimental import pallas as pl
from jax.experimental.pallas import tpu as pltpu


def _round_up(x, m):
    return ((x + m - 1) // m) * m


def mlp_kernel(x_ref, w1_ref, nb1_ref, w2_ref, c_ref, o_ref, acc_ref):
    """One (batch tile, hidden tile) step of y = ReLU(x @ W1 + b1) @ w2 + b2.

    x_ref  : (TB, E)  f32   -- batch tile (pipelined; constant across hidden axis)
    w1_ref : (E, TN)  bf16  -- hidden chunk of W1 (streamed / double-buffered)
    nb1_ref: (1, TN)  f32   -- -b1 chunk (folded bias)
    w2_ref : (1, TN)  f32   -- layer-2 weight chunk as a row
    c_ref  : (1, 1)   f32   -- SMEM scalar: b1 . w2 + b2
    o_ref  : (1, TB)  f32   -- lane-dense output row (revisited across hidden axis)
    acc_ref: (TB, 1)  f32   -- VMEM accumulator scratch
    """
    n = pl.program_id(1)

    @pl.when(n == 0)
    def _init():
        acc_ref[...] = jnp.zeros_like(acc_ref)

    # Layer 1 on the MXU: in-kernel bf16 cast of the f32 x tile (free VPU slot).
    xb = x_ref[...].astype(w1_ref.dtype)
    h = jnp.dot(xb, w1_ref[...], preferred_element_type=jnp.float32)   # (TB, TN) f32

    # Folded bias: ReLU(h + b1) . w2 == max(h, -b1) . w2 + (b1 . w2)
    h = jnp.maximum(h, nb1_ref[...])                                   # 1 VPU pass

    # Layer 2 partial (TN -> 1): VPU multiply + XLU lane reduce into the (TB, 1)
    # accumulator -- no per-step sublane->lane relayout.
    acc_ref[...] += jnp.sum(h * w2_ref[...], axis=-1, keepdims=True)

    @pl.when(n == pl.num_programs(1) - 1)
    def _finalize():
        # One relayout per batch tile: (TB, 1) accumulator -> lane-dense (1, TB).
        y = jnp.sum(acc_ref[...], axis=-1) + c_ref[0, 0]               # (TB,)
        o_ref[...] = y.reshape(o_ref.shape).astype(o_ref.dtype)


def prepare_params(w1, b1, w2, b2, *, mxu_dtype=jnp.bfloat16, max_hidden_tile=2048):
    """One-time weight prep (pad / cast / bias-fold). Hoist out of the hot path.

    w1: [E, H]; b1: [H]; w2: [H, 1]; b2: [1]
    """
    E, H = w1.shape
    # Lane-dense hidden dim; multiples of 256 feed the full 256-wide v6e/v7x MXU.
    lane = 128 if H <= 128 else 256
    Hp = _round_up(H, lane)
    if Hp > max_hidden_tile:                      # make hidden tiles divide Hp exactly
        Hp = _round_up(Hp, max_hidden_tile)

    # Zero-padded hidden units contribute exactly 0: h=0, max(0, -b1_pad=0)=0, w2_pad=0.
    w1_p = jnp.pad(w1.astype(mxu_dtype), ((0, 0), (0, Hp - H)))
    nb1 = jnp.pad(-b1.astype(jnp.float32), (0, Hp - H)).reshape(1, Hp)
    w2_row = jnp.pad(w2.astype(jnp.float32)[:, 0], (0, Hp - H)).reshape(1, Hp)
    c = (jnp.sum(b1.astype(jnp.float32) * w2.astype(jnp.float32)[:, 0])
         + b2.astype(jnp.float32).reshape(())).reshape(1, 1)
    return w1_p, nb1, w2_row, c


def mlp_forward(x, w1_p, nb1, w2_row, c, *, max_batch_tile=512, max_hidden_tile=2048):
    """y = ReLU(x @ w1 + b1) @ w2 + b2 with prepared params (see prepare_params)."""
    B, E = x.shape
    assert w1_p.shape[0] == E
    Hp = w1_p.shape[1]

    # Batch tiling: a single full tile for small B (no padding at all), otherwise
    # 512-row tiles (safe under v5e's 16 MiB scoped / v7x's 64 MiB total VMEM).
    if B <= max_batch_tile:
        TB, num_tiles = B, 1
    else:
        TB = max_batch_tile                       # multiple of 128
        num_tiles = pl.cdiv(B, TB)                # partial last x tile handled by Pallas
    Bp = num_tiles * TB

    # Hidden tiling: stream W1 instead of holding it fully resident.
    TN = min(Hp, max_hidden_tile)
    if Hp % TN != 0:
        TN = Hp
    nh = Hp // TN

    # Explicit scoped-VMEM budget: double-buffered pipeline operands + intermediates.
    est = (2 * TB * E * 4        # x tile (f32), double-buffered
           + 2 * E * TN * 2      # w1 tile (bf16), double-buffered
           + 4 * TN * 4          # -b1 / w2 rows (f32)
           + TB * TN * 4         # (TB, TN) f32 hidden intermediate
           + TB * 4              # (TB, 1) accumulator scratch
           + 2 * TB * 4)         # (1, TB) output block
    vmem_limit = int(min(max(est * 1.5 + (4 << 20), 16 << 20), 64 << 20))

    out = pl.pallas_call(
        mlp_kernel,
        out_shape=jax.ShapeDtypeStruct((1, Bp), jnp.float32),
        grid_spec=pltpu.PrefetchScalarGridSpec(
            num_scalar_prefetch=0,
            grid=(num_tiles, nh),
            in_specs=[
                # x: one (TB, E) f32 tile per batch step; block index is constant
                # across the hidden axis so it is not re-DMA'd per hidden step.
                pl.BlockSpec((TB, E), lambda i, n: (i, 0)),
                # W1 / -b1 / w2: streamed along the hidden (reduction) axis.
                pl.BlockSpec((E, TN), lambda i, n: (0, n)),
                pl.BlockSpec((1, TN), lambda i, n: (0, n)),
                pl.BlockSpec((1, TN), lambda i, n: (0, n)),
                # Folded scalar constant (b1 . w2 + b2) lives in SMEM.
                pl.BlockSpec(memory_space=pltpu.MemorySpace.SMEM),
            ],
            # Lane-dense (1, Bp) output; (1, TB) blocks revisited across the
            # hidden axis, written once at the last hidden step.
            out_specs=pl.BlockSpec((1, TB), lambda i, n: (0, i)),
            scratch_shapes=[pltpu.VMEM((TB, 1), jnp.float32)],
        ),
        compiler_params=pltpu.CompilerParams(
            dimension_semantics=("parallel", "arbitrary"),
            vmem_limit_bytes=vmem_limit),
    )(x, w1_p, nb1, w2_row, c)

    return out[0, :B].reshape(B, 1)


def init_params(key, embedding_dim, hidden_dim):
    """Deterministic init mimicking nn.Linear (weights stored as [in, out])."""
    k1, k2, k3, k4 = jax.random.split(key, 4)
    lim1 = 1.0 / (embedding_dim ** 0.5)
    lim2 = 1.0 / (hidden_dim ** 0.5)
    w1 = jax.random.uniform(k1, (embedding_dim, hidden_dim), jnp.float32, -lim1, lim1)
    b1 = jax.random.uniform(k2, (hidden_dim,), jnp.float32, -lim1, lim1)
    w2 = jax.random.uniform(k3, (hidden_dim, 1), jnp.float32, -lim2, lim2)
    b2 = jax.random.uniform(k4, (1,), jnp.float32, -lim2, lim2)
    return w1, b1, w2, b2


if __name__ == "__main__":
    batch = 8
    embedding_dim = 32
    hidden_dim = 32
    # label_dim in the PyTorch __init__ is unused by the forward pass.

    key = jax.random.PRNGKey(0)
    kx, kp = jax.random.split(key)
    x = jax.random.normal(kx, (batch, embedding_dim), dtype=jnp.float32)
    w1, b1, w2, b2 = init_params(kp, embedding_dim, hidden_dim)

    # Weight prep (pad / cast / bias-fold) hoisted out of the per-call path.
    params = prepare_params(w1, b1, w2, b2)
    out = jax.block_until_ready(mlp_forward(x, *params))

    # Pure-JAX reference using the same bf16 MXU operands (f32 accumulation).
    x_m = x.astype(jnp.bfloat16).astype(jnp.float32)
    w1_m = w1.astype(jnp.bfloat16).astype(jnp.float32)
    h_ref = jnp.maximum(
        jnp.dot(x_m, w1_m, precision=lax.Precision.HIGHEST) + b1, 0.0)
    ref = jnp.dot(h_ref, w2, precision=lax.Precision.HIGHEST) + b2

    assert out.shape == (batch, 1)
    assert jnp.allclose(out, ref, atol=1e-3, rtol=1e-3), \
        float(jnp.max(jnp.abs(out - ref)))

    print("KERNEL_OK")
</pallas_src>

<mosaic_0001>
module attributes {stable_mosaic.version = 11 : i64} {
  func.func @mlp_kernel(%arg0: i32, %arg1: i32, %arg2: memref<8x32xf32, #tpu.memory_space<vmem>>, %arg3: memref<32x128xbf16, #tpu.memory_space<vmem>>, %arg4: memref<1x128xf32, #tpu.memory_space<vmem>>, %arg5: memref<1x128xf32, #tpu.memory_space<vmem>>, %arg6: memref<1x1xf32, #tpu.memory_space<smem>>, %arg7: memref<1x8xf32, #tpu.memory_space<vmem>>, %arg8: memref<8x1xf32, #tpu.memory_space<vmem>>) attributes {dimension_semantics = [#tpu.dimension_semantics<parallel>, #tpu.dimension_semantics<arbitrary>], iteration_bounds = array<i64: 1, 1>, scalar_prefetch = 0 : i64, scratch_operands = 1 : i64, tpu.core_type = #tpu.core_type<tc>, window_params = [{transform_indices = @transform_0, window_bounds = array<i64: 8, 32>}, {transform_indices = @transform_1, window_bounds = array<i64: 32, 128>}, {transform_indices = @transform_2, window_bounds = array<i64: 1, 128>}, {transform_indices = @transform_3, window_bounds = array<i64: 1, 128>}, {transform_indices = @transform_4, window_bounds = array<i64: 1, 1>}, {transform_indices = @transform_5, window_bounds = array<i64: 1, 8>}]} {
    %c0_i32 = arith.constant 0 : i32
    %0 = arith.cmpi eq, %arg1, %c0_i32 : i32
    %1 = arith.extui %0 : i1 to i32
    %c0_i32_0 = arith.constant 0 : i32
    %2 = arith.cmpi ne, %1, %c0_i32_0 : i32
    scf.if %2 {
      %cst_15 = arith.constant 0.000000e+00 : f32
      %21 = vector.broadcast %cst_15 : f32 to vector<8x1xf32>
      %c0_16 = arith.constant 0 : index
      %c0_17 = arith.constant 0 : index
      %22 = vector.load %arg8[%c0_16, %c0_17] : memref<8x1xf32, #tpu.memory_space<vmem>>, vector<8x1xf32>
      tpu.vector_store %arg8[%c0_16, %c0_17], %21 {strides = array<i32>} : memref<8x1xf32, #tpu.memory_space<vmem>>, vector<8x1xf32>,
    } else {
    }
    %c0 = arith.constant 0 : index
    %c0_1 = arith.constant 0 : index
    %3 = vector.load %arg2[%c0, %c0_1] : memref<8x32xf32, #tpu.memory_space<vmem>>, vector<8x32xf32>
    %4 = arith.truncf %3 : vector<8x32xf32> to vector<8x32xbf16>
    %c0_2 = arith.constant 0 : index
    %c0_3 = arith.constant 0 : index
    %5 = vector.load %arg3[%c0_2, %c0_3] : memref<32x128xbf16, #tpu.memory_space<vmem>>, vector<32x128xbf16>
    %cst = arith.constant dense<0.000000e+00> : vector<8x128xf32>
    %6 = tpu.matmul %4, %5, %cst {dimension_numbers = #tpu.dot_dimension_numbers<[1], [0], [0], [1], [0, 0, 1, 1], [], []>} : vector<8x32xbf16>, vector<32x128xbf16>, vector<8x128xf32> -> vector<8x128xf32>
    %c0_4 = arith.constant 0 : index
    %c0_5 = arith.constant 0 : index
    %7 = vector.load %arg4[%c0_4, %c0_5] : memref<1x128xf32, #tpu.memory_space<vmem>>, vector<1x128xf32>
    %8 = vector.broadcast %7 : vector<1x128xf32> to vector<8x128xf32>
    %9 = arith.maximumf %6, %8 : vector<8x128xf32>
    %c0_6 = arith.constant 0 : index
    %c0_7 = arith.constant 0 : index
    %10 = vector.load %arg8[%c0_6, %c0_7] : memref<8x1xf32, #tpu.memory_space<vmem>>, vector<8x1xf32>
    %c0_8 = arith.constant 0 : index
    %c0_9 = arith.constant 0 : index
    %11 = vector.load %arg5[%c0_8, %c0_9] : memref<1x128xf32, #tpu.memory_space<vmem>>, vector<1x128xf32>
    %12 = vector.broadcast %11 : vector<1x128xf32> to vector<8x128xf32>
    %13 = arith.mulf %9, %12 : vector<8x128xf32>
    %cst_10 = arith.constant dense<0.000000e+00> : vector<8xf32>
    %14 = vector.multi_reduction <add>, %13, %cst_10 [1] : vector<8x128xf32> to vector<8xf32>
    %15 = vector.shape_cast %14 : vector<8xf32> to vector<8x1xf32>
    %16 = arith.addf %10, %15 : vector<8x1xf32>
    %c0_11 = arith.constant 0 : index
    %c0_12 = arith.constant 0 : index
    %17 = vector.load %arg8[%c0_11, %c0_12] : memref<8x1xf32, #tpu.memory_space<vmem>>, vector<8x1xf32>
    tpu.vector_store %arg8[%c0_11, %c0_12], %16 {strides = array<i32>} : memref<8x1xf32, #tpu.memory_space<vmem>>, vector<8x1xf32>,
    %c0_i32_13 = arith.constant 0 : i32
    %18 = arith.cmpi eq, %arg1, %c0_i32_13 : i32
    %19 = arith.extui %18 : i1 to i32
    %c0_i32_14 = arith.constant 0 : i32
    %20 = arith.cmpi ne, %19, %c0_i32_14 : i32
    scf.if %20 {
      %c0_15 = arith.constant 0 : index
      %c0_16 = arith.constant 0 : index
      %21 = vector.load %arg8[%c0_15, %c0_16] : memref<8x1xf32, #tpu.memory_space<vmem>>, vector<8x1xf32>
      %cst_17 = arith.constant dense<0.000000e+00> : vector<8xf32>
      %22 = vector.multi_reduction <add>, %21, %cst_17 [1] : vector<8x1xf32> to vector<8xf32>
      %c0_18 = arith.constant 0 : index
      %c0_19 = arith.constant 0 : index
      %23 = memref.load %arg6[%c0_18, %c0_19] : memref<1x1xf32, #tpu.memory_space<smem>>
      %24 = vector.broadcast %23 : f32 to vector<8xf32>
      %25 = arith.addf %22, %24 : vector<8xf32>
      %26 = vector.shape_cast %25 : vector<8xf32> to vector<1x8xf32>
      %c0_20 = arith.constant 0 : index
      %c0_21 = arith.constant 0 : index
      %27 = vector.load %arg7[%c0_20, %c0_21] : memref<1x8xf32, #tpu.memory_space<vmem>>, vector<1x8xf32>
      tpu.vector_store %arg7[%c0_20, %c0_21], %26 {strides = array<i32>} : memref<1x8xf32, #tpu.memory_space<vmem>>, vector<1x8xf32>,
    } else {
    }
    return
  }
  func.func @transform_0(%arg0: i32, %arg1: i32) -> (i32, i32) {
    %c0_i32 = arith.constant 0 : i32
    %c0_i32_0 = arith.constant 0 : i32
    return %arg0, %c0_i32 : i32, i32
  }
  func.func @transform_1(%arg0: i32, %arg1: i32) -> (i32, i32) {
    %c0_i32 = arith.constant 0 : i32
    %c0_i32_0 = arith.constant 0 : i32
    return %c0_i32, %arg1 : i32, i32
  }
  func.func @transform_2(%arg0: i32, %arg1: i32) -> (i32, i32) {
    %c0_i32 = arith.constant 0 : i32
    %c0_i32_0 = arith.constant 0 : i32
    return %c0_i32, %arg1 : i32, i32
  }
  func.func @transform_3(%arg0: i32, %arg1: i32) -> (i32, i32) {
    %c0_i32 = arith.constant 0 : i32
    %c0_i32_0 = arith.constant 0 : i32
    return %c0_i32, %arg1 : i32, i32
  }
  func.func @transform_4(%arg0: i32, %arg1: i32) -> (i32, i32) {
    %c0_i32 = arith.constant 0 : i32
    %c0_i32_0 = arith.constant 0 : i32
    %c0_i32_1 = arith.constant 0 : i32
    return %c0_i32, %c0_i32_0 : i32, i32
  }
  func.func @transform_5(%arg0: i32, %arg1: i32) -> (i32, i32) {
    %c0_i32 = arith.constant 0 : i32
    %c0_i32_0 = arith.constant 0 : i32
    return %c0_i32, %arg0 : i32, i32
  }
}

</mosaic_0001>

<llo_original>
// kernel: tpu_custom_call.1
$region0: #{tpu_custom_call.1}
  #allocation0 [shape = 'u32[]', space=smem, size = 0x4, offset = 0x4, fixed_abs, tag = 'smem constant byte address 0x4 - core index']
  #allocation1 [shape = 'u32[144,128]{1,0:T(1,128)}', space=vmem, size = 0x12000, scoped, tag = 'internal scratch']
  #allocation2 [shape = 'f32[8,1]{1,0:T(8,128)}', space=vmem, size = 0x1000, scoped, tag = 'scratch operand']
  #allocation3 [shape = 'f32[1,1]{1,0:T(1,128)S(6)}', space=smem, size = 0x200, scoped, tag = 'scoped memory for tpu_custom_call.1']
  %s0 = inlined_call_operand.hbm [shape: f32[8,32], index: 0, kind: input, shape index: {}]
  %s1 = inlined_call_operand.hbm [shape: bf16[32,128], index: 1, kind: input, shape index: {}]
  %s2 = inlined_call_operand.vmem [shape: f32[1,128], index: 2, kind: input, shape index: {}]
  %s3 = inlined_call_operand.vmem [shape: f32[1,128], index: 3, kind: input, shape index: {}]
  %s4 = inlined_call_operand.<no memory space> [shape: f32[1,1], index: 4, kind: input, shape index: {}]
  %s5 = inlined_call_operand.hbm [shape: f32[1,8], index: 5, kind: output, shape index: {}]
  %s6 = sld [smem:[#allocation0]]
  $region46: #{tpu_custom_call.1} parent=0
    _
  %s8 = ssub.s32 1, %s6
  %s9 = scalar_select 0, %s8, %s6
  %10 = sst [smem:[#allocation3]] %s4
  $region1: #{tpu_custom_call.1} parent=0
    #allocation4 [shape = 'u8[4096]{0}', space=vmem, size = 0x1000, scoped, tag = 'input window, operand 0, single buffered']
    #allocation5 [shape = 's32[1]{0}', space=sflag, size = 0x4, scoped, tag = 'scoped memory for tpu_custom_call.1']
    #allocation6 [shape = 's32[1]{0}', space=sflag, size = 0x4, scoped, tag = 'scoped memory for tpu_custom_call.1']
    #allocation7 [shape = 'u8[8192]{0}', space=vmem, size = 0x2000, scoped, tag = 'input window, operand 1, single buffered']
    #allocation8 [shape = 's32[1]{0}', space=sflag, size = 0x4, scoped, tag = 'scoped memory for tpu_custom_call.1']
    #allocation9 [shape = 'u8[512]{0}', space=vmem, size = 0x400, scoped, tag = 'output window, operand 0, single buffered']
    %11 = vsyncpa [#allocation5], 0
    %12 = vsyncpa [#allocation8], 0
    %13 = vsyncpa [#allocation6], 0
    // Predicated region
    $region2: #{tpu_custom_call.1} parent=1 // pred_check
      _
    $region3: #{tpu_custom_call.1} parent=1 // pred_check_branch
      %15 = sbr.rel (0) target = $region5
    $region4: #{tpu_custom_call.1} parent=1 // pred_region
      %s17 = ssub.s32 128, 128
      %18 = vsyncadd [#allocation5], %s17
      %s20 = sshll.u32 [#allocation4], 4
      %s21 = int_to_ptr.vmem [resolvable:$true] %s20
      %23 = dma.hbm_to_vmem [thread:$0]  %s0, 128, %s21, [#allocation5]
    $region5: #{tpu_custom_call.1} parent=1 // pred_fallthru
      _
    // Predicated region
    $region6: #{tpu_custom_call.1} parent=1 // pred_check
      _
    $region7: #{tpu_custom_call.1} parent=1 // pred_check_branch
      %25 = sbr.rel (0) target = $region9
    $region8: #{tpu_custom_call.1} parent=1 // pred_region
      %s27 = ssub.s32 256, 256
      %28 = vsyncadd [#allocation8], %s27
      %s29 = sshll.u32 [#allocation7], 4
      %s30 = int_to_ptr.vmem [resolvable:$true] %s29
      %35 = dma.hbm_to_vmem [thread:$0]  %s1, 256, %s30, [#allocation8], 64, 64, 4
    $region9: #{tpu_custom_call.1} parent=1 // pred_fallthru
      _
    // Predicated region
    $region10: #{tpu_custom_call.1} parent=1 // pred_check
      _
    $region11: #{tpu_custom_call.1} parent=1 // pred_check_branch
      %37 = sbr.rel (0) target = $region13
    $region12: #{tpu_custom_call.1} parent=1 // pred_region
      _
    $region13: #{tpu_custom_call.1} parent=1 // pred_fallthru
      _
    // Predicated region
    $region14: #{tpu_custom_call.1} parent=1 // pred_check
      _
    $region15: #{tpu_custom_call.1} parent=1 // pred_check_branch
      %39 = sbr.rel (0) target = $region17
    $region16: #{tpu_custom_call.1} parent=1 // pred_region
      _
    $region17: #{tpu_custom_call.1} parent=1 // pred_fallthru
      _
    // Predicated region
    $region18: #{tpu_custom_call.1} parent=1 // pred_check
      _
    $region19: #{tpu_custom_call.1} parent=1 // pred_check_branch
      %41 = sbr.rel (0) target = $region21
    $region20: #{tpu_custom_call.1} parent=1 // pred_region
      _
    $region21: #{tpu_custom_call.1} parent=1 // pred_fallthru
      _
    // Predicated region
    $region22: #{tpu_custom_call.1} parent=1 // pred_check
      _
    $region23: #{tpu_custom_call.1} parent=1 // pred_check_branch
      %43 = sbr.rel (0) target = $region25
    $region24: #{tpu_custom_call.1} parent=1 // pred_region
      %44 = dma.done [#allocation5], 128
    $region25: #{tpu_custom_call.1} parent=1 // pred_fallthru
      _
    // Predicated region
    $region26: #{tpu_custom_call.1} parent=1 // pred_check
      _
    $region27: #{tpu_custom_call.1} parent=1 // pred_check_branch
      %46 = sbr.rel (0) target = $region29
    $region28: #{tpu_custom_call.1} parent=1 // pred_region
      %47 = dma.done [#allocation8], 256
    $region29: #{tpu_custom_call.1} parent=1 // pred_fallthru
      _
    %p49 = scmp.eq.s32.totalorder 0, 0
    // Predicated region
    $region30: #{tpu_custom_call.1} parent=1 // pred_check
      %p50 = pneg %p49
    $region31: #{tpu_custom_call.1} parent=1 // pred_check_branch
      %52 = sbr.rel (%p50) target = $region33
    $region32: #{tpu_custom_call.1} parent=1 // pred_region
      %vm53 = vcmask 7168
      %54 = vst.msk [vmem:[#allocation2] sm:$0xff] %vm53, 0.0
    $region33: #{tpu_custom_call.1} parent=1 // pred_fallthru
      _
    %v55 = vld [vmem:[#allocation4] sm:$0xff]
    %v56 = vpack.c.bf16 %v55, %v55
    %v57 = vld [vmem:[#allocation7] sm:$0xf]
    %v58 = vld [vmem:[#allocation7 + $0x4] sm:$0xf]
    %v59 = vld [vmem:[#allocation7 + $0x8] sm:$0xf]
    %v60 = vld [vmem:[#allocation7 + $0xc] sm:$0xf]
    %v65 = vunpack.c.l.b16 %v57
    %v66 = vunpack.c.l.b16 %v58
    %v67 = vunpack.c.l.b16 %v59
    %v68 = vunpack.c.l.b16 %v60
    %v69 = vpack.c.b16 %v66, %v65
    %v70 = vpack.c.b16 %v68, %v67
    %vm73 = vcmask 261120
    %v75 = vsel %vm73, %v56, 0
    %77 = vmatprep.subr.bf16.mxu0 0
    %78 = vmatpush1.bf16.msra.mxu0 0
    %79 = vmatprep.subr.bf16.mxu0 0
    %80 = vmatpush1.bf16.msra.mxu0 0
    %81 = vmatprep.subr.bf16.mxu0 0
    %82 = vmatpush1.bf16.msra.mxu0 0
    %83 = vmatprep.subr.bf16.mxu0 0
    %84 = vmatpush1.bf16.msra.mxu0 0
    %85 = vmatprep.subr.bf16.mxu0 0
    %86 = vmatpush1.bf16.msra.mxu0 0
    %87 = vmatprep.subr.bf16.mxu0 0
    %88 = vmatpush1.bf16.msra.mxu0 0
    %89 = vmatprep.subr.bf16.mxu0 0
    %90 = vmatpush1.bf16.msra.mxu0 %v70
    %91 = vmatprep.subr.bf16.mxu0 0
    %92 = vmatpush1.bf16.msra.mxu0 %v69
    %93 = vmatprep.subr.bf16.mxu0 0
    %94 = vmatpush2.bf16.msra.mxu0 0
    %95 = vmatprep.subr.bf16.mxu0 0
    %96 = vmatpush2.bf16.msra.mxu0 0
    %97 = vmatprep.subr.bf16.mxu0 0
    %98 = vmatpush2.bf16.msra.mxu0 0
    %99 = vmatprep.subr.bf16.mxu0 0
    %100 = vmatpush2.bf16.msra.mxu0 0
    %101 = vmatprep.subr.bf16.mxu0 0
    %102 = vmatpush2.bf16.msra.mxu0 0
    %103 = vmatprep.subr.bf16.mxu0 0
    %104 = vmatpush2.bf16.msra.mxu0 0
    %105 = vmatprep.subr.bf16.mxu0 0
    %106 = vmatpush2.bf16.msra.mxu0 0
    %107 = vmatprep.subr.bf16.mxu0 0
    %108 = vmatpush2.bf16.msra.mxu0 0
    %109 = vmatprep.mubr.bf16.mxu0 0
    %110 = vmatmul.mubr.bf16.gmra.mxu0 %v75
    %v111 = vpop.f32.mrf.mxu0
    %v112 = vadd.f32 0.0, %v111
    %v113 = vpop.f32.mrf.mxu0
    %v114 = vpop.f32.mrf.mxu0
    %v115 = vpop.f32.mrf.mxu0
    %116 = vdwg.mxu0
    %v117 = vld [vmem:[%s2] sm:$0x1]
    %v119 = vlaneseq
    %v120 = vshrl.u32 %v119, 7
    %v121 = vsub.s32 0, %v120
    %v122 = vrot.slane %v117, %v121
    %v124 = vmax.f32 %v112, %v122
    %v125 = vld [vmem:[#allocation2] sm:$0xff]
    %v126 = vld [vmem:[%s3] sm:$0x1]
    %v128 = vlaneseq
    %v129 = vshrl.u32 %v128, 7
    %v130 = vsub.s32 0, %v129
    %v131 = vrot.slane %v126, %v130
    %v133 = vmul.f32 %v124, %v131
    %134 = vadd.xlane.f32.xlu0 %v133
    %v135 = vpop.xlane.xlu0 %134
    %v136 = vadd.f32 %v125, %v135
    %vm137 = vcmask 7168
    %138 = vst.msk [vmem:[#allocation2] sm:$0xff] %vm137, %v136
    // Predicated region
    $region34: #{tpu_custom_call.1} parent=1 // pred_check
      %p139 = pneg %p49
    $region35: #{tpu_custom_call.1} parent=1 // pred_check_branch
      %141 = sbr.rel (%p139) target = $region37
    $region36: #{tpu_custom_call.1} parent=1 // pred_region
      %v142 = vld [vmem:[#allocation2] sm:$0xff]
      %v143 = vadd.f32 %v142, 0.0
      %s144 = sld [smem:[#allocation3]]
      %v145 = vstv %s144
      %v146 = vadd.f32 %v143, %v145
      %148 = vset.pattern.permute.xlu0 0
      %149 = vperm.xlu0 %148, %v146
      %v150 = vpop.permute.xlu0 %149
      %v151 = vlaneseq
      %v152 = vand.u32 %v151, 127
      %v153 = vlaneseq
      %v154 = vshrl.u32 %v153, 7
      %v155 = vsub.s32 %v152, %v154
      %v156 = vrot.slane %v150, %v155
      %vm158 = vcmask 57344
      %159 = vst.msk [vmem:[#allocation9] sm:$0x1] %vm158, %v156
    $region37: #{tpu_custom_call.1} parent=1 // pred_fallthru
      _
    // Predicated region
    $region38: #{tpu_custom_call.1} parent=1 // pred_check
      _
    $region39: #{tpu_custom_call.1} parent=1 // pred_check_branch
      %161 = sbr.rel (0) target = $region41
    $region40: #{tpu_custom_call.1} parent=1 // pred_region
      %s163 = ssub.s32 16, 16
      %164 = vsyncadd [#allocation6], %s163
      %s166 = sshll.u32 [#allocation9], 4
      %s167 = int_to_ptr.vmem [resolvable:$true] %s166
      %169 = dma.vmem_to_hbm [thread:$0]  %s167, 16, %s5, [#allocation6]
    $region41: #{tpu_custom_call.1} parent=1 // pred_fallthru
      _
    // Predicated region
    $region42: #{tpu_custom_call.1} parent=1 // pred_check
      _
    $region43: #{tpu_custom_call.1} parent=1 // pred_check_branch
      %171 = sbr.rel (0) target = $region45
    $region44: #{tpu_custom_call.1} parent=1 // pred_region
      %172 = dma.done [#allocation6], 16
    $region45: #{tpu_custom_call.1} parent=1 // pred_fallthru
      _
    %173 = vsyncpa [#allocation5], 1
    %174 = vsyncpa [#allocation8], 1
    %175 = vsyncpa [#allocation6], 1

</llo_original>
